<compile_context>
chip_gen: v5e
topology: v5e:2x2
jax: 0.10.0
libtpu: 0.0.40
codegen_flags: <defaults>
</compile_context>

<pallas_src>
import jax
import jax.numpy as jnp
from jax.experimental import pallas as pl
from jax.experimental.pallas import tpu as pltpu


def vae_kernel(x_ref, eps_ref,
               w1_ref, b1_ref,
               w2mu_ref, b2mu_ref, w2lv_ref, b2lv_ref,
               w3_ref, b3_ref, w4_ref, b4_ref,
               recon_ref, mu_ref, logvar_ref):
    x = x_ref[...]

    # ---- encoder: Linear -> ReLU ----------------------------------------
    h1 = jnp.dot(x, w1_ref[...], preferred_element_type=jnp.float32) + b1_ref[...]
    h1 = jnp.maximum(h1, 0.0)

    # ---- encoder head, split into mu / logvar (no intra-vreg chunk) ------
    mu = jnp.dot(h1, w2mu_ref[...], preferred_element_type=jnp.float32) + b2mu_ref[...]
    logvar = jnp.dot(h1, w2lv_ref[...], preferred_element_type=jnp.float32) + b2lv_ref[...]

    # ---- reparameterize: z = mu + eps * exp(0.5 * logvar) ----------------
    z = mu + eps_ref[...] * jnp.exp(0.5 * logvar)

    # ---- decoder: Linear -> ReLU -> Linear -------------------------------
    h2 = jnp.dot(z, w3_ref[...], preferred_element_type=jnp.float32) + b3_ref[...]
    h2 = jnp.maximum(h2, 0.0)
    recon = jnp.dot(h2, w4_ref[...], preferred_element_type=jnp.float32) + b4_ref[...]

    recon_ref[...] = recon
    mu_ref[...] = mu
    logvar_ref[...] = logvar


def vae_forward(x, eps, params, *, batch_tile=None):
    """Fused VAE forward. x: (B, input_dim) f32, eps: (B, latent_dim) f32."""
    (w1, b1, w2, b2, w3, b3, w4, b4) = params
    B, input_dim = x.shape
    latent_dim = eps.shape[-1]
    hidden_dim = w1.shape[-1]

    # Split the encoder head in the wrapper -> lane-dense outputs, no in-kernel slice.
    w2_mu, w2_lv = w2[:, :latent_dim], w2[:, latent_dim:]
    b2_mu, b2_lv = b2[:, :latent_dim], b2[:, latent_dim:]

    # Tile selection: single grid step if the whole batch fits a big tile,
    # otherwise large sublane-aligned tiles (amortizes per-step overhead and
    # fills the MXU M dimension).  Re-derive the cap downward on v7x (64 MiB
    # VMEM) for very large feature dims.
    if batch_tile is None:
        batch_tile = min(B, 512)
    if batch_tile >= B:
        batch_tile = B                       # one grid step, block == full array
        padded_b = B
    else:
        batch_tile = max(8, 8 * (batch_tile // 8))   # keep (8,128) tiling happy
        padded_b = pl.cdiv(B, batch_tile) * batch_tile

    if padded_b != B:                        # handle ragged batches via zero-pad
        pad = padded_b - B
        x = jnp.pad(x, ((0, pad), (0, 0)))
        eps = jnp.pad(eps, ((0, pad), (0, 0)))

    grid = (padded_b // batch_tile,)

    def batched(feat):
        return pl.BlockSpec((batch_tile, feat), lambda i: (i, 0))

    def full(shape):
        # Constant index_map: block never changes, so the pipeline does not
        # re-copy weights between grid steps.
        return pl.BlockSpec(shape, lambda i, _n=len(shape): (0,) * _n)

    in_specs = [
        batched(input_dim),                  # x
        batched(latent_dim),                 # eps
        full(w1.shape), full(b1.shape),
        full(w2_mu.shape), full(b2_mu.shape),
        full(w2_lv.shape), full(b2_lv.shape),
        full(w3.shape), full(b3.shape),
        full(w4.shape), full(b4.shape),
    ]
    out_specs = [
        batched(input_dim),                  # recon_x
        batched(latent_dim),                 # mu
        batched(latent_dim),                 # logvar
    ]
    out_shape = [
        jax.ShapeDtypeStruct((padded_b, input_dim), jnp.float32),
        jax.ShapeDtypeStruct((padded_b, latent_dim), jnp.float32),
        jax.ShapeDtypeStruct((padded_b, latent_dim), jnp.float32),
    ]

    # Advisory cost estimate so XLA schedules neighbours around this call well.
    flops = 2 * padded_b * (input_dim * hidden_dim
                            + hidden_dim * 2 * latent_dim
                            + latent_dim * hidden_dim
                            + hidden_dim * input_dim)
    weight_bytes = 4 * sum(int(a.size) for a in
                           (w1, b1, w2_mu, b2_mu, w2_lv, b2_lv, w3, b3, w4, b4))
    io_bytes = 4 * padded_b * (2 * input_dim + 4 * latent_dim)
    cost = pl.CostEstimate(flops=flops,
                           transcendentals=padded_b * latent_dim,
                           bytes_accessed=weight_bytes + io_bytes)

    recon, mu, logvar = pl.pallas_call(
        vae_kernel,
        out_shape=out_shape,
        grid_spec=pltpu.PrefetchScalarGridSpec(
            num_scalar_prefetch=0,
            grid=grid,
            in_specs=in_specs,
            out_specs=out_specs,
        ),
        compiler_params=pltpu.CompilerParams(
            dimension_semantics=("parallel",)),
        cost_estimate=cost,
    )(x, eps, w1, b1, w2_mu, b2_mu, w2_lv, b2_lv, w3, b3, w4, b4)

    if padded_b != B:
        recon, mu, logvar = recon[:B], mu[:B], logvar[:B]
    return recon, mu, logvar


def init_params(key, input_dim, hidden_dim, latent_dim):
    """Deterministic synthetic weights. Weights are (in, out) = PyTorch W.T."""
    ks = jax.random.split(key, 8)
    s = 0.1
    w1 = s * jax.random.normal(ks[0], (input_dim, hidden_dim), jnp.float32)
    b1 = s * jax.random.normal(ks[1], (1, hidden_dim), jnp.float32)
    w2 = s * jax.random.normal(ks[2], (hidden_dim, 2 * latent_dim), jnp.float32)
    b2 = s * jax.random.normal(ks[3], (1, 2 * latent_dim), jnp.float32)
    w3 = s * jax.random.normal(ks[4], (latent_dim, hidden_dim), jnp.float32)
    b3 = s * jax.random.normal(ks[5], (1, hidden_dim), jnp.float32)
    w4 = s * jax.random.normal(ks[6], (hidden_dim, input_dim), jnp.float32)
    b4 = s * jax.random.normal(ks[7], (1, input_dim), jnp.float32)
    return (w1, b1, w2, b2, w3, b3, w4, b4)


def vae_reference(x, eps, params):
    """Plain-JAX reference mirroring the PyTorch forward."""
    (w1, b1, w2, b2, w3, b3, w4, b4) = params
    L = eps.shape[-1]
    h = jnp.maximum(x @ w1 + b1, 0.0) @ w2 + b2
    mu, logvar = h[:, :L], h[:, L:]
    z = mu + eps * jnp.exp(0.5 * logvar)
    recon = jnp.maximum(z @ w3 + b3, 0.0) @ w4 + b4
    return recon, mu, logvar


if __name__ == "__main__":
    input_dim, hidden_dim, latent_dim = 32, 32, 16

    key = jax.random.PRNGKey(0)
    k_x, k_eps, k_p = jax.random.split(key, 3)
    params = init_params(k_p, input_dim, hidden_dim, latent_dim)

    # --- path 1: small batch -> single grid step (whole problem in one tile) ---
    B1 = 16
    x1 = jax.random.normal(k_x, (B1, input_dim), jnp.float32)
    eps1 = jax.random.normal(k_eps, (B1, latent_dim), jnp.float32)
    recon1, mu1, lv1 = vae_forward(x1, eps1, params)
    jax.block_until_ready((recon1, mu1, lv1))
    r_ref, mu_ref, lv_ref = vae_reference(x1, eps1, params)
    assert jnp.allclose(recon1, r_ref, atol=1e-5, rtol=1e-5)
    assert jnp.allclose(mu1, mu_ref, atol=1e-5, rtol=1e-5)
    assert jnp.allclose(lv1, lv_ref, atol=1e-5, rtol=1e-5)

    # --- path 2: ragged batch tiled over the grid (exercises padding + grid) ---
    B2 = 20
    x2 = jax.random.normal(jax.random.fold_in(k_x, 1), (B2, input_dim), jnp.float32)
    eps2 = jax.random.normal(jax.random.fold_in(k_eps, 1), (B2, latent_dim), jnp.float32)
    recon2, mu2, lv2 = vae_forward(x2, eps2, params, batch_tile=8)
    jax.block_until_ready((recon2, mu2, lv2))
    r_ref2, mu_ref2, lv_ref2 = vae_reference(x2, eps2, params)
    assert jnp.allclose(recon2, r_ref2, atol=1e-5, rtol=1e-5)
    assert jnp.allclose(mu2, mu_ref2, atol=1e-5, rtol=1e-5)
    assert jnp.allclose(lv2, lv_ref2, atol=1e-5, rtol=1e-5)

    print("KERNEL_OK")
</pallas_src>

<mosaic_0001>
module attributes {stable_mosaic.version = 11 : i64} {
  func.func @vae_kernel(%arg0: i32, %arg1: memref<16x32xf32, #tpu.memory_space<vmem>>, %arg2: memref<16x16xf32, #tpu.memory_space<vmem>>, %arg3: memref<32x32xf32, #tpu.memory_space<vmem>>, %arg4: memref<1x32xf32, #tpu.memory_space<vmem>>, %arg5: memref<32x16xf32, #tpu.memory_space<vmem>>, %arg6: memref<1x16xf32, #tpu.memory_space<vmem>>, %arg7: memref<32x16xf32, #tpu.memory_space<vmem>>, %arg8: memref<1x16xf32, #tpu.memory_space<vmem>>, %arg9: memref<16x32xf32, #tpu.memory_space<vmem>>, %arg10: memref<1x32xf32, #tpu.memory_space<vmem>>, %arg11: memref<32x32xf32, #tpu.memory_space<vmem>>, %arg12: memref<1x32xf32, #tpu.memory_space<vmem>>, %arg13: memref<16x32xf32, #tpu.memory_space<vmem>>, %arg14: memref<16x16xf32, #tpu.memory_space<vmem>>, %arg15: memref<16x16xf32, #tpu.memory_space<vmem>>) attributes {dimension_semantics = [#tpu.dimension_semantics<parallel>], iteration_bounds = array<i64: 1>, scalar_prefetch = 0 : i64, scratch_operands = 0 : i64, tpu.core_type = #tpu.core_type<tc>, window_params = [{transform_indices = @transform_0, window_bounds = array<i64: 16, 32>}, {transform_indices = @transform_1, window_bounds = array<i64: 16, 16>}, {pipeline_mode = #tpu.pipeline_mode<synchronous>, transform_indices = @transform_2, window_bounds = array<i64: 32, 32>}, {pipeline_mode = #tpu.pipeline_mode<synchronous>, transform_indices = @transform_3, window_bounds = array<i64: 1, 32>}, {pipeline_mode = #tpu.pipeline_mode<synchronous>, transform_indices = @transform_4, window_bounds = array<i64: 32, 16>}, {pipeline_mode = #tpu.pipeline_mode<synchronous>, transform_indices = @transform_5, window_bounds = array<i64: 1, 16>}, {pipeline_mode = #tpu.pipeline_mode<synchronous>, transform_indices = @transform_6, window_bounds = array<i64: 32, 16>}, {pipeline_mode = #tpu.pipeline_mode<synchronous>, transform_indices = @transform_7, window_bounds = array<i64: 1, 16>}, {pipeline_mode = #tpu.pipeline_mode<synchronous>, transform_indices = @transform_8, window_bounds = array<i64: 16, 32>}, {pipeline_mode = #tpu.pipeline_mode<synchronous>, transform_indices = @transform_9, window_bounds = array<i64: 1, 32>}, {pipeline_mode = #tpu.pipeline_mode<synchronous>, transform_indices = @transform_10, window_bounds = array<i64: 32, 32>}, {pipeline_mode = #tpu.pipeline_mode<synchronous>, transform_indices = @transform_11, window_bounds = array<i64: 1, 32>}, {transform_indices = @transform_12, window_bounds = array<i64: 16, 32>}, {transform_indices = @transform_13, window_bounds = array<i64: 16, 16>}, {transform_indices = @transform_14, window_bounds = array<i64: 16, 16>}]} {
    %c0 = arith.constant 0 : index
    %c0_0 = arith.constant 0 : index
    %0 = vector.load %arg1[%c0, %c0_0] : memref<16x32xf32, #tpu.memory_space<vmem>>, vector<16x32xf32>
    %c0_1 = arith.constant 0 : index
    %c0_2 = arith.constant 0 : index
    %1 = vector.load %arg3[%c0_1, %c0_2] : memref<32x32xf32, #tpu.memory_space<vmem>>, vector<32x32xf32>
    %cst = arith.constant dense<0.000000e+00> : vector<16x32xf32>
    %2 = tpu.matmul %0, %1, %cst {dimension_numbers = #tpu.dot_dimension_numbers<[1], [0], [0], [1], [0, 0, 1, 1], [], []>} : vector<16x32xf32>, vector<32x32xf32>, vector<16x32xf32> -> vector<16x32xf32>
    %c0_3 = arith.constant 0 : index
    %c0_4 = arith.constant 0 : index
    %3 = vector.load %arg4[%c0_3, %c0_4] : memref<1x32xf32, #tpu.memory_space<vmem>>, vector<1x32xf32>
    %4 = vector.broadcast %3 : vector<1x32xf32> to vector<16x32xf32>
    %5 = arith.addf %2, %4 : vector<16x32xf32>
    %cst_5 = arith.constant 0.000000e+00 : f32
    %6 = vector.broadcast %cst_5 : f32 to vector<16x32xf32>
    %7 = arith.maximumf %5, %6 : vector<16x32xf32>
    %c0_6 = arith.constant 0 : index
    %c0_7 = arith.constant 0 : index
    %8 = vector.load %arg5[%c0_6, %c0_7] : memref<32x16xf32, #tpu.memory_space<vmem>>, vector<32x16xf32>
    %cst_8 = arith.constant dense<0.000000e+00> : vector<16x16xf32>
    %9 = tpu.matmul %7, %8, %cst_8 {dimension_numbers = #tpu.dot_dimension_numbers<[1], [0], [0], [1], [0, 0, 1, 1], [], []>} : vector<16x32xf32>, vector<32x16xf32>, vector<16x16xf32> -> vector<16x16xf32>
    %c0_9 = arith.constant 0 : index
    %c0_10 = arith.constant 0 : index
    %10 = vector.load %arg6[%c0_9, %c0_10] : memref<1x16xf32, #tpu.memory_space<vmem>>, vector<1x16xf32>
    %11 = vector.broadcast %10 : vector<1x16xf32> to vector<16x16xf32>
    %12 = arith.addf %9, %11 : vector<16x16xf32>
    %c0_11 = arith.constant 0 : index
    %c0_12 = arith.constant 0 : index
    %13 = vector.load %arg7[%c0_11, %c0_12] : memref<32x16xf32, #tpu.memory_space<vmem>>, vector<32x16xf32>
    %cst_13 = arith.constant dense<0.000000e+00> : vector<16x16xf32>
    %14 = tpu.matmul %7, %13, %cst_13 {dimension_numbers = #tpu.dot_dimension_numbers<[1], [0], [0], [1], [0, 0, 1, 1], [], []>} : vector<16x32xf32>, vector<32x16xf32>, vector<16x16xf32> -> vector<16x16xf32>
    %c0_14 = arith.constant 0 : index
    %c0_15 = arith.constant 0 : index
    %15 = vector.load %arg8[%c0_14, %c0_15] : memref<1x16xf32, #tpu.memory_space<vmem>>, vector<1x16xf32>
    %16 = vector.broadcast %15 : vector<1x16xf32> to vector<16x16xf32>
    %17 = arith.addf %14, %16 : vector<16x16xf32>
    %c0_16 = arith.constant 0 : index
    %c0_17 = arith.constant 0 : index
    %18 = vector.load %arg2[%c0_16, %c0_17] : memref<16x16xf32, #tpu.memory_space<vmem>>, vector<16x16xf32>
    %cst_18 = arith.constant 5.000000e-01 : f32
    %19 = vector.broadcast %cst_18 : f32 to vector<16x16xf32>
    %20 = arith.mulf %19, %17 : vector<16x16xf32>
    %21 = math.exp %20 : vector<16x16xf32>
    %22 = arith.mulf %18, %21 : vector<16x16xf32>
    %23 = arith.addf %12, %22 : vector<16x16xf32>
    %c0_19 = arith.constant 0 : index
    %c0_20 = arith.constant 0 : index
    %24 = vector.load %arg9[%c0_19, %c0_20] : memref<16x32xf32, #tpu.memory_space<vmem>>, vector<16x32xf32>
    %cst_21 = arith.constant dense<0.000000e+00> : vector<16x32xf32>
    %25 = tpu.matmul %23, %24, %cst_21 {dimension_numbers = #tpu.dot_dimension_numbers<[1], [0], [0], [1], [0, 0, 1, 1], [], []>} : vector<16x16xf32>, vector<16x32xf32>, vector<16x32xf32> -> vector<16x32xf32>
    %c0_22 = arith.constant 0 : index
    %c0_23 = arith.constant 0 : index
    %26 = vector.load %arg10[%c0_22, %c0_23] : memref<1x32xf32, #tpu.memory_space<vmem>>, vector<1x32xf32>
    %27 = vector.broadcast %26 : vector<1x32xf32> to vector<16x32xf32>
    %28 = arith.addf %25, %27 : vector<16x32xf32>
    %cst_24 = arith.constant 0.000000e+00 : f32
    %29 = vector.broadcast %cst_24 : f32 to vector<16x32xf32>
    %30 = arith.maximumf %28, %29 : vector<16x32xf32>
    %c0_25 = arith.constant 0 : index
    %c0_26 = arith.constant 0 : index
    %31 = vector.load %arg11[%c0_25, %c0_26] : memref<32x32xf32, #tpu.memory_space<vmem>>, vector<32x32xf32>
    %cst_27 = arith.constant dense<0.000000e+00> : vector<16x32xf32>
    %32 = tpu.matmul %30, %31, %cst_27 {dimension_numbers = #tpu.dot_dimension_numbers<[1], [0], [0], [1], [0, 0, 1, 1], [], []>} : vector<16x32xf32>, vector<32x32xf32>, vector<16x32xf32> -> vector<16x32xf32>
    %c0_28 = arith.constant 0 : index
    %c0_29 = arith.constant 0 : index
    %33 = vector.load %arg12[%c0_28, %c0_29] : memref<1x32xf32, #tpu.memory_space<vmem>>, vector<1x32xf32>
    %34 = vector.broadcast %33 : vector<1x32xf32> to vector<16x32xf32>
    %35 = arith.addf %32, %34 : vector<16x32xf32>
    %c0_30 = arith.constant 0 : index
    %c0_31 = arith.constant 0 : index
    %36 = vector.load %arg13[%c0_30, %c0_31] : memref<16x32xf32, #tpu.memory_space<vmem>>, vector<16x32xf32>
    tpu.vector_store %arg13[%c0_30, %c0_31], %35 {strides = array<i32>} : memref<16x32xf32, #tpu.memory_space<vmem>>, vector<16x32xf32>,
    %c0_32 = arith.constant 0 : index
    %c0_33 = arith.constant 0 : index
    %37 = vector.load %arg14[%c0_32, %c0_33] : memref<16x16xf32, #tpu.memory_space<vmem>>, vector<16x16xf32>
    tpu.vector_store %arg14[%c0_32, %c0_33], %12 {strides = array<i32>} : memref<16x16xf32, #tpu.memory_space<vmem>>, vector<16x16xf32>,
    %c0_34 = arith.constant 0 : index
    %c0_35 = arith.constant 0 : index
    %38 = vector.load %arg15[%c0_34, %c0_35] : memref<16x16xf32, #tpu.memory_space<vmem>>, vector<16x16xf32>
    tpu.vector_store %arg15[%c0_34, %c0_35], %17 {strides = array<i32>} : memref<16x16xf32, #tpu.memory_space<vmem>>, vector<16x16xf32>,
    return
  }
  func.func @transform_0(%arg0: i32) -> (i32, i32) {
    %c0_i32 = arith.constant 0 : i32
    %c0_i32_0 = arith.constant 0 : i32
    return %arg0, %c0_i32 : i32, i32
  }
  func.func @transform_1(%arg0: i32) -> (i32, i32) {
    %c0_i32 = arith.constant 0 : i32
    %c0_i32_0 = arith.constant 0 : i32
    return %arg0, %c0_i32 : i32, i32
  }
  func.func @transform_2(%arg0: i32) -> (i32, i32) {
    %c0_i32 = arith.constant 0 : i32
    %c0_i32_0 = arith.constant 0 : i32
    %c0_i32_1 = arith.constant 0 : i32
    return %c0_i32, %c0_i32_0 : i32, i32
  }
  func.func @transform_3(%arg0: i32) -> (i32, i32) {
    %c0_i32 = arith.constant 0 : i32
    %c0_i32_0 = arith.constant 0 : i32
    %c0_i32_1 = arith.constant 0 : i32
    return %c0_i32, %c0_i32_0 : i32, i32
  }
  func.func @transform_4(%arg0: i32) -> (i32, i32) {
    %c0_i32 = arith.constant 0 : i32
    %c0_i32_0 = arith.constant 0 : i32
    %c0_i32_1 = arith.constant 0 : i32
    return %c0_i32, %c0_i32_0 : i32, i32
  }
  func.func @transform_5(%arg0: i32) -> (i32, i32) {
    %c0_i32 = arith.constant 0 : i32
    %c0_i32_0 = arith.constant 0 : i32
    %c0_i32_1 = arith.constant 0 : i32
    return %c0_i32, %c0_i32_0 : i32, i32
  }
  func.func @transform_6(%arg0: i32) -> (i32, i32) {
    %c0_i32 = arith.constant 0 : i32
    %c0_i32_0 = arith.constant 0 : i32
    %c0_i32_1 = arith.constant 0 : i32
    return %c0_i32, %c0_i32_0 : i32, i32
  }
  func.func @transform_7(%arg0: i32) -> (i32, i32) {
    %c0_i32 = arith.constant 0 : i32
    %c0_i32_0 = arith.constant 0 : i32
    %c0_i32_1 = arith.constant 0 : i32
    return %c0_i32, %c0_i32_0 : i32, i32
  }
  func.func @transform_8(%arg0: i32) -> (i32, i32) {
    %c0_i32 = arith.constant 0 : i32
    %c0_i32_0 = arith.constant 0 : i32
    %c0_i32_1 = arith.constant 0 : i32
    return %c0_i32, %c0_i32_0 : i32, i32
  }
  func.func @transform_9(%arg0: i32) -> (i32, i32) {
    %c0_i32 = arith.constant 0 : i32
    %c0_i32_0 = arith.constant 0 : i32
    %c0_i32_1 = arith.constant 0 : i32
    return %c0_i32, %c0_i32_0 : i32, i32
  }
  func.func @transform_10(%arg0: i32) -> (i32, i32) {
    %c0_i32 = arith.constant 0 : i32
    %c0_i32_0 = arith.constant 0 : i32
    %c0_i32_1 = arith.constant 0 : i32
    return %c0_i32, %c0_i32_0 : i32, i32
  }
  func.func @transform_11(%arg0: i32) -> (i32, i32) {
    %c0_i32 = arith.constant 0 : i32
    %c0_i32_0 = arith.constant 0 : i32
    %c0_i32_1 = arith.constant 0 : i32
    return %c0_i32, %c0_i32_0 : i32, i32
  }
  func.func @transform_12(%arg0: i32) -> (i32, i32) {
    %c0_i32 = arith.constant 0 : i32
    %c0_i32_0 = arith.constant 0 : i32
    return %arg0, %c0_i32 : i32, i32
  }
  func.func @transform_13(%arg0: i32) -> (i32, i32) {
    %c0_i32 = arith.constant 0 : i32
    %c0_i32_0 = arith.constant 0 : i32
    return %arg0, %c0_i32 : i32, i32
  }
  func.func @transform_14(%arg0: i32) -> (i32, i32) {
    %c0_i32 = arith.constant 0 : i32
    %c0_i32_0 = arith.constant 0 : i32
    return %arg0, %c0_i32 : i32, i32
  }
}

</mosaic_0001>

<llo_original>
// kernel: tpu_custom_call.1
$region0: #{tpu_custom_call.1}
  #allocation0 [shape = 'u32[]', space=smem, size = 0x4, offset = 0x4, fixed_abs, tag = 'smem constant byte address 0x4 - core index']
  #allocation1 [shape = 'u32[72,128]{1,0:T(1,128)}', space=vmem, size = 0x9000, scoped, tag = 'internal scratch']
  %s0 = inlined_call_operand.vmem [shape: f32[16,32], index: 0, kind: input, shape index: {}]
  %s1 = inlined_call_operand.hbm [shape: f32[16,16], index: 1, kind: input, shape index: {}]
  %s2 = inlined_call_operand.vmem [shape: f32[32,32], index: 2, kind: input, shape index: {}]
  %s3 = inlined_call_operand.vmem [shape: f32[1,32], index: 3, kind: input, shape index: {}]
  %s4 = inlined_call_operand.vmem [shape: f32[32,16], index: 4, kind: input, shape index: {}]
  %s5 = inlined_call_operand.vmem [shape: f32[1,16], index: 5, kind: input, shape index: {}]
  %s6 = inlined_call_operand.vmem [shape: f32[32,16], index: 6, kind: input, shape index: {}]
  %s7 = inlined_call_operand.vmem [shape: f32[1,16], index: 7, kind: input, shape index: {}]
  %s8 = inlined_call_operand.hbm [shape: f32[16,32], index: 8, kind: input, shape index: {}]
  %s9 = inlined_call_operand.vmem [shape: f32[1,32], index: 9, kind: input, shape index: {}]
  %s10 = inlined_call_operand.vmem [shape: f32[32,32], index: 10, kind: input, shape index: {}]
  %s11 = inlined_call_operand.vmem [shape: f32[1,32], index: 11, kind: input, shape index: {}]
  %s12 = inlined_call_operand.hbm [shape: f32[16,32], index: 12, kind: output, shape index: {0}]
  %s13 = inlined_call_operand.hbm [shape: f32[16,16], index: 13, kind: output, shape index: {1}]
  %s14 = inlined_call_operand.hbm [shape: f32[16,16], index: 14, kind: output, shape index: {2}]
  %15 = xla_tuple %s12, %s13, %s14
  %s16 = sld [smem:[#allocation0]]
  $region82: #{tpu_custom_call.1} parent=0
    _
  %s18 = ssub.s32 1, %s16
  %s19 = scalar_select 0, %s18, %s16
  $region1: #{tpu_custom_call.1} parent=0
    #allocation2 [shape = 'u8[8192]{0}', space=vmem, size = 0x2000, scoped, tag = 'input window, operand 1, single buffered']
    #allocation3 [shape = 's32[1]{0}', space=sflag, size = 0x4, scoped, tag = 'scoped memory for tpu_custom_call.1']
    #allocation4 [shape = 's32[1]{0}', space=sflag, size = 0x4, scoped, tag = 'scoped memory for tpu_custom_call.1']
    #allocation5 [shape = 'u8[8192]{0}', space=vmem, size = 0x2000, scoped, tag = 'input window, operand 8, single buffered']
    #allocation6 [shape = 's32[1]{0}', space=sflag, size = 0x4, scoped, tag = 'scoped memory for tpu_custom_call.1']
    #allocation7 [shape = 'u8[8192]{0}', space=vmem, size = 0x2000, scoped, tag = 'output window, operand 0, single buffered']
    #allocation8 [shape = 'u8[8192]{0}', space=vmem, size = 0x2000, scoped, tag = 'output window, operand 1, single buffered']
    #allocation9 [shape = 's32[1]{0}', space=sflag, size = 0x4, scoped, tag = 'scoped memory for tpu_custom_call.1']
    #allocation10 [shape = 'u8[8192]{0}', space=vmem, size = 0x2000, scoped, tag = 'output window, operand 2, single buffered']
    %20 = vsyncpa [#allocation3], 0
    %21 = vsyncpa [#allocation6], 0
    %22 = vsyncpa [#allocation4], 0
    %23 = vsyncpa [#allocation9], 0
    // Predicated region
    $region2: #{tpu_custom_call.1} parent=1 // pred_check
      _
    $region3: #{tpu_custom_call.1} parent=1 // pred_check_branch
      %25 = sbr.rel (0) target = $region5
    $region4: #{tpu_custom_call.1} parent=1 // pred_region
      _
    $region5: #{tpu_custom_call.1} parent=1 // pred_fallthru
      _
    // Predicated region
    $region6: #{tpu_custom_call.1} parent=1 // pred_check
      _
    $region7: #{tpu_custom_call.1} parent=1 // pred_check_branch
      %27 = sbr.rel (0) target = $region9
    $region8: #{tpu_custom_call.1} parent=1 // pred_region
      %29 = vsyncadd [#allocation3], 0
      %s30 = sshll.u32 %s1, 4
      %s31 = int_to_ptr.hbm [resolvable:$true] %s30
      %s32 = sshll.u32 [#allocation2], 4
      %s33 = int_to_ptr.vmem [resolvable:$true] %s32
      %38 = dma.hbm_to_vmem [thread:$0]  %s31, 256, %s33, [#allocation3], 128, 128, 8
    $region9: #{tpu_custom_call.1} parent=1 // pred_fallthru
      _
    // Predicated region
    $region10: #{tpu_custom_call.1} parent=1 // pred_check
      _
    $region11: #{tpu_custom_call.1} parent=1 // pred_check_branch
      %40 = sbr.rel (0) target = $region13
    $region12: #{tpu_custom_call.1} parent=1 // pred_region
      _
    $region13: #{tpu_custom_call.1} parent=1 // pred_fallthru
      _
    // Predicated region
    $region14: #{tpu_custom_call.1} parent=1 // pred_check
      _
    $region15: #{tpu_custom_call.1} parent=1 // pred_check_branch
      %42 = sbr.rel (0) target = $region17
    $region16: #{tpu_custom_call.1} parent=1 // pred_region
      _
    $region17: #{tpu_custom_call.1} parent=1 // pred_fallthru
      _
    // Predicated region
    $region18: #{tpu_custom_call.1} parent=1 // pred_check
      _
    $region19: #{tpu_custom_call.1} parent=1 // pred_check_branch
      %44 = sbr.rel (0) target = $region21
    $region20: #{tpu_custom_call.1} parent=1 // pred_region
      _
    $region21: #{tpu_custom_call.1} parent=1 // pred_fallthru
      _
    // Predicated region
    $region22: #{tpu_custom_call.1} parent=1 // pred_check
      _
    $region23: #{tpu_custom_call.1} parent=1 // pred_check_branch
      %46 = sbr.rel (0) target = $region25
    $region24: #{tpu_custom_call.1} parent=1 // pred_region
      _
    $region25: #{tpu_custom_call.1} parent=1 // pred_fallthru
      _
    // Predicated region
    $region26: #{tpu_custom_call.1} parent=1 // pred_check
      _
    $region27: #{tpu_custom_call.1} parent=1 // pred_check_branch
      %48 = sbr.rel (0) target = $region29
    $region28: #{tpu_custom_call.1} parent=1 // pred_region
      _
    $region29: #{tpu_custom_call.1} parent=1 // pred_fallthru
      _
    // Predicated region
    $region30: #{tpu_custom_call.1} parent=1 // pred_check
      _
    $region31: #{tpu_custom_call.1} parent=1 // pred_check_branch
      %50 = sbr.rel (0) target = $region33
    $region32: #{tpu_custom_call.1} parent=1 // pred_region
      _
    $region33: #{tpu_custom_call.1} parent=1 // pred_fallthru
      _
    // Predicated region
    $region34: #{tpu_custom_call.1} parent=1 // pred_check
      _
    $region35: #{tpu_custom_call.1} parent=1 // pred_check_branch
      %52 = sbr.rel (0) target = $region37
    $region36: #{tpu_custom_call.1} parent=1 // pred_region
      %54 = vsyncadd [#allocation6], 0
      %s55 = sshll.u32 %s8, 4
      %s56 = int_to_ptr.hbm [resolvable:$true] %s55
      %s57 = sshll.u32 [#allocation5], 4
      %s58 = int_to_ptr.vmem [resolvable:$true] %s57
      %63 = dma.hbm_to_vmem [thread:$0]  %s56, 256, %s58, [#allocation6], 128, 128, 8
    $region37: #{tpu_custom_call.1} parent=1 // pred_fallthru
      _
    // Predicated region
    $region38: #{tpu_custom_call.1} parent=1 // pred_check
      _
    $region39: #{tpu_custom_call.1} parent=1 // pred_check_branch
      %65 = sbr.rel (0) target = $region41
    $region40: #{tpu_custom_call.1} parent=1 // pred_region
      _
    $region41: #{tpu_custom_call.1} parent=1 // pred_fallthru
      _
    // Predicated region
    $region42: #{tpu_custom_call.1} parent=1 // pred_check
      _
    $region43: #{tpu_custom_call.1} parent=1 // pred_check_branch
      %67 = sbr.rel (0) target = $region45
    $region44: #{tpu_custom_call.1} parent=1 // pred_region
      _
    $region45: #{tpu_custom_call.1} parent=1 // pred_fallthru
      _
    // Predicated region
    $region46: #{tpu_custom_call.1} parent=1 // pred_check
      _
    $region47: #{tpu_custom_call.1} parent=1 // pred_check_branch
      %69 = sbr.rel (0) target = $region49
    $region48: #{tpu_custom_call.1} parent=1 // pred_region
      _
    $region49: #{tpu_custom_call.1} parent=1 // pred_fallthru
      _
    // Predicated region
    $region50: #{tpu_custom_call.1} parent=1 // pred_check
      _
    $region51: #{tpu_custom_call.1} parent=1 // pred_check_branch
      %71 = sbr.rel (0) target = $region53
    $region52: #{tpu_custom_call.1} parent=1 // pred_region
      %73 = dma.done [#allocation3], 256
    $region53: #{tpu_custom_call.1} parent=1 // pred_fallthru
      _
    // Predicated region
    $region54: #{tpu_custom_call.1} parent=1 // pred_check
      _
    $region55: #{tpu_custom_call.1} parent=1 // pred_check_branch
      %75 = sbr.rel (0) target = $region57
    $region56: #{tpu_custom_call.1} parent=1 // pred_region
      %77 = dma.done [#allocation6], 256
    $region57: #{tpu_custom_call.1} parent=1 // pred_fallthru
      _
    %v78 = vld [vmem:[%s0] sm:$0xff]
    %v79 = vld [vmem:[%s0 + $0x8] sm:$0xff]
    %v80 = vld [vmem:[%s2] sm:$0xff]
    %v81 = vld [vmem:[%s2 + $0x8] sm:$0xff]
    %v82 = vld [vmem:[%s2 + $0x10] sm:$0xff]
    %v83 = vld [vmem:[%s2 + $0x18] sm:$0xff]
    %v84 = vld [vmem:[%s3] sm:$0x1]
    %v86 = vperm.slane %v84, 0
    %vm88 = vcmask 261120
    %v90 = vsel %vm88, %v78, 0
    %v93 = vsel %vm88, %v79, 0
    %95 = vmatpush.msra.mxu0 0.0
    %96 = vmatpush.msra.mxu0 0.0
    %97 = vmatpush.msra.mxu0 0.0
    %98 = vmatpush.msra.mxu0 0.0
    %99 = vmatpush.msra.mxu0 0.0
    %100 = vmatpush.msra.mxu0 0.0
    %101 = vmatpush.msra.mxu0 0.0
    %102 = vmatpush.msra.mxu0 0.0
    %103 = vmatpush.msra.mxu0 0.0
    %104 = vmatpush.msra.mxu0 0.0
    %105 = vmatpush.msra.mxu0 0.0
    %106 = vmatpush.msra.mxu0 0.0
    %107 = vmatpush.msra.mxu0 %v83
    %108 = vmatpush.msra.mxu0 %v82
    %109 = vmatpush.msra.mxu0 %v81
    %110 = vmatpush.msra.mxu0 %v80
    %111 = vmatmul.f32.gmra.mxu0 %v90
    %v112 = vpop.f32.mrf.mxu0
    %v113 = vadd.f32 %v86, %v112
    %114 = vmatmul.f32.gmra.mxu0 %v93
    %v115 = vpop.f32.mrf.mxu0
    %v116 = vadd.f32 %v86, %v115
    %117 = vdwg.mxu0
    %v118 = vmax.f32 %v113, 0.0
    %v119 = vmax.f32 %v116, 0.0
    %v120 = vld [vmem:[%s4] sm:$0xff]
    %v121 = vld [vmem:[%s4 + $0x8] sm:$0xff]
    %v122 = vld [vmem:[%s4 + $0x10] sm:$0xff]
    %v123 = vld [vmem:[%s4 + $0x18] sm:$0xff]
    %v124 = vld [vmem:[%s5] sm:$0x1]
    %v126 = vperm.slane %v124, 0
    %v129 = vsel %vm88, %v118, 0
    %v132 = vsel %vm88, %v119, 0
    %134 = vmatpush.msra.mxu0 0.0
    %135 = vmatpush.msra.mxu0 0.0
    %136 = vmatpush.msra.mxu0 0.0
    %137 = vmatpush.msra.mxu0 0.0
    %138 = vmatpush.msra.mxu0 0.0
    %139 = vmatpush.msra.mxu0 0.0
    %140 = vmatpush.msra.mxu0 0.0
    %141 = vmatpush.msra.mxu0 0.0
    %142 = vmatpush.msra.mxu0 0.0
    %143 = vmatpush.msra.mxu0 0.0
    %144 = vmatpush.msra.mxu0 0.0
    %145 = vmatpush.msra.mxu0 0.0
    %146 = vmatpush.msra.mxu0 %v123
    %147 = vmatpush.msra.mxu0 %v122
    %148 = vmatpush.msra.mxu0 %v121
    %149 = vmatpush.msra.mxu0 %v120
    %150 = vmatmul.f32.gmra.mxu0 %v129
    %v151 = vpop.f32.mrf.mxu0
    %v152 = vadd.f32 %v126, %v151
    %153 = vmatmul.f32.gmra.mxu0 %v132
    %v154 = vpop.f32.mrf.mxu0
    %v155 = vadd.f32 %v126, %v154
    %156 = vdwg.mxu0
    %v157 = vld [vmem:[%s6] sm:$0xff]
    %v158 = vld [vmem:[%s6 + $0x8] sm:$0xff]
    %v159 = vld [vmem:[%s6 + $0x10] sm:$0xff]
    %v160 = vld [vmem:[%s6 + $0x18] sm:$0xff]
    %v161 = vld [vmem:[%s7] sm:$0x1]
    %v163 = vperm.slane %v161, 0
    %165 = vmatpush.msra.mxu0 0.0
    %166 = vmatpush.msra.mxu0 0.0
    %167 = vmatpush.msra.mxu0 0.0
    %168 = vmatpush.msra.mxu0 0.0
    %169 = vmatpush.msra.mxu0 0.0
    %170 = vmatpush.msra.mxu0 0.0
    %171 = vmatpush.msra.mxu0 0.0
    %172 = vmatpush.msra.mxu0 0.0
    %173 = vmatpush.msra.mxu0 0.0
    %174 = vmatpush.msra.mxu0 0.0
    %175 = vmatpush.msra.mxu0 0.0
    %176 = vmatpush.msra.mxu0 0.0
    %177 = vmatpush.msra.mxu0 %v160
    %178 = vmatpush.msra.mxu0 %v159
    %179 = vmatpush.msra.mxu0 %v158
    %180 = vmatpush.msra.mxu0 %v157
    %181 = vmatmul.f32.gmra.mxu0 %v129
    %v182 = vpop.f32.mrf.mxu0
    %v183 = vadd.f32 %v163, %v182
    %184 = vmatmul.f32.gmra.mxu0 %v132
    %v185 = vpop.f32.mrf.mxu0
    %v186 = vadd.f32 %v163, %v185
    %187 = vdwg.mxu0
    %v188 = vld [vmem:[#allocation2] sm:$0xff]
    %v189 = vld [vmem:[#allocation2 + $0x8] sm:$0xff]
    %v190 = vmul.f32 %v183, 0.5
    %v191 = vmul.f32 %v186, 0.5
    %v192 = vmul.f32 %v190, 1.442695
    %v193 = vpow.pop %v192
    %v194 = vmul.f32 %v191, 1.442695
    %v195 = vpow.pop %v194
    %v196 = vmul.f32 %v188, %v193
    %v197 = vmul.f32 %v189, %v195
    %v198 = vadd.f32 %v152, %v196
    %v199 = vadd.f32 %v155, %v197
    %v200 = vld [vmem:[#allocation5] sm:$0xff]
    %v201 = vld [vmem:[#allocation5 + $0x8] sm:$0xff]
    %v202 = vld [vmem:[%s9] sm:$0x1]
    %v204 = vperm.slane %v202, 0
    %vm206 = vcmask 130048
    %v208 = vsel %vm206, %v198, 0
    %v211 = vsel %vm206, %v199, 0
    %213 = vmatpush.msra.mxu0 0.0
    %214 = vmatpush.msra.mxu0 0.0
    %215 = vmatpush.msra.mxu0 0.0
    %216 = vmatpush.msra.mxu0 0.0
    %217 = vmatpush.msra.mxu0 0.0
    %218 = vmatpush.msra.mxu0 0.0
    %219 = vmatpush.msra.mxu0 0.0
    %220 = vmatpush.msra.mxu0 0.0
    %221 = vmatpush.msra.mxu0 0.0
    %222 = vmatpush.msra.mxu0 0.0
    %223 = vmatpush.msra.mxu0 0.0
    %224 = vmatpush.msra.mxu0 0.0
    %225 = vmatpush.msra.mxu0 0.0
    %226 = vmatpush.msra.mxu0 0.0
    %227 = vmatpush.msra.mxu0 %v201
    %228 = vmatpush.msra.mxu0 %v200
    %229 = vmatmul.f32.gmra.mxu0 %v208
    %v230 = vpop.f32.mrf.mxu0
    %v231 = vadd.f32 %v204, %v230
    %232 = vmatmul.f32.gmra.mxu0 %v211
    %v233 = vpop.f32.mrf.mxu0
    %v234 = vadd.f32 %v204, %v233
    %235 = vdwg.mxu0
    %v236 = vmax.f32 %v231, 0.0
    %v237 = vmax.f32 %v234, 0.0
    %v238 = vld [vmem:[%s10] sm:$0xff]
    %v239 = vld [vmem:[%s10 + $0x8] sm:$0xff]
    %v240 = vld [vmem:[%s10 + $0x10] sm:$0xff]
    %v241 = vld [vmem:[%s10 + $0x18] sm:$0xff]
    %v242 = vld [vmem:[%s11] sm:$0x1]
    %v244 = vperm.slane %v242, 0
    %v247 = vsel %vm88, %v236, 0
    %v250 = vsel %vm88, %v237, 0
    %252 = vmatpush.msra.mxu0 0.0
    %253 = vmatpush.msra.mxu0 0.0
    %254 = vmatpush.msra.mxu0 0.0
    %255 = vmatpush.msra.mxu0 0.0
    %256 = vmatpush.msra.mxu0 0.0
    %257 = vmatpush.msra.mxu0 0.0
    %258 = vmatpush.msra.mxu0 0.0
    %259 = vmatpush.msra.mxu0 0.0
    %260 = vmatpush.msra.mxu0 0.0
    %261 = vmatpush.msra.mxu0 0.0
    %262 = vmatpush.msra.mxu0 0.0
    %263 = vmatpush.msra.mxu0 0.0
    %264 = vmatpush.msra.mxu0 %v241
    %265 = vmatpush.msra.mxu0 %v240
    %266 = vmatpush.msra.mxu0 %v239
    %267 = vmatpush.msra.mxu0 %v238
    %268 = vmatmul.f32.gmra.mxu0 %v247
    %v269 = vpop.f32.mrf.mxu0
    %v270 = vadd.f32 %v244, %v269
    %271 = vmatmul.f32.gmra.mxu0 %v250
    %v272 = vpop.f32.mrf.mxu0
    %v273 = vadd.f32 %v244, %v272
    %274 = vdwg.mxu0
    %275 = vst.msk [vmem:[#allocation7] sm:$0xff] %vm88, %v270
    %276 = vst.msk [vmem:[#allocation7 + $0x8] sm:$0xff] %vm88, %v273
    %277 = vst.msk [vmem:[#allocation8] sm:$0xff] %vm206, %v152
    %278 = vst.msk [vmem:[#allocation8 + $0x8] sm:$0xff] %vm206, %v155
    %279 = vst.msk [vmem:[#allocation10] sm:$0xff] %vm206, %v183
    %280 = vst.msk [vmem:[#allocation10 + $0x8] sm:$0xff] %vm206, %v186
    // Predicated region
    $region58: #{tpu_custom_call.1} parent=1 // pred_check
      _
    $region59: #{tpu_custom_call.1} parent=1 // pred_check_branch
      %282 = sbr.rel (0) target = $region61
    $region60: #{tpu_custom_call.1} parent=1 // pred_region
      %284 = vsyncadd [#allocation4], 0
      %s285 = sshll.u32 [#allocation7], 4
      %s286 = int_to_ptr.vmem [resolvable:$true] %s285
      %s287 = sshll.u32 %s12, 4
      %s288 = int_to_ptr.hbm [resolvable:$true] %s287
      %293 = dma.vmem_to_hbm [thread:$0]  %s286, 256, %s288, [#allocation4], 128, 128, 8
    $region61: #{tpu_custom_call.1} parent=1 // pred_fallthru
      _
    // Predicated region
    $region62: #{tpu_custom_call.1} parent=1 // pred_check
      _
    $region63: #{tpu_custom_call.1} parent=1 // pred_check_branch
      %295 = sbr.rel (0) target = $region65
    $region64: #{tpu_custom_call.1} parent=1 // pred_region
      %297 = vsyncadd [#allocation9], 0
      %s298 = sshll.u32 [#allocation8], 4
      %s299 = int_to_ptr.vmem [resolvable:$true] %s298
      %s300 = sshll.u32 %s13, 4
      %s301 = int_to_ptr.hbm [resolvable:$true] %s300
      %306 = dma.vmem_to_hbm [thread:$0]  %s299, 256, %s301, [#allocation9], 128, 128, 8
    $region65: #{tpu_custom_call.1} parent=1 // pred_fallthru
      _
    // Predicated region
    $region66: #{tpu_custom_call.1} parent=1 // pred_check
      _
    $region67: #{tpu_custom_call.1} parent=1 // pred_check_branch
      %308 = sbr.rel (0) target = $region69
    $region68: #{tpu_custom_call.1} parent=1 // pred_region
      %310 = vsyncadd [#allocation9], 0
      %s311 = sshll.u32 [#allocation10], 4
      %s312 = int_to_ptr.vmem [resolvable:$true] %s311
      %s313 = sshll.u32 %s14, 4
      %s314 = int_to_ptr.hbm [resolvable:$true] %s313
      %319 = dma.vmem_to_hbm [thread:$0]  %s312, 256, %s314, [#allocation9], 128, 128, 8
    $region69: #{tpu_custom_call.1} parent=1 // pred_fallthru
      _
    // Predicated region
    $region70: #{tpu_custom_call.1} parent=1 // pred_check
      _
    $region71: #{tpu_custom_call.1} parent=1 // pred_check_branch
      %321 = sbr.rel (0) target = $region73
    $region72: #{tpu_custom_call.1} parent=1 // pred_region
      %323 = dma.done [#allocation4], 256
    $region73: #{tpu_custom_call.1} parent=1 // pred_fallthru
      _
    // Predicated region
    $region74: #{tpu_custom_call.1} parent=1 // pred_check
      _
    $region75: #{tpu_custom_call.1} parent=1 // pred_check_branch
      %325 = sbr.rel (0) target = $region77
    $region76: #{tpu_custom_call.1} parent=1 // pred_region
      %327 = dma.done [#allocation9], 256
    $region77: #{tpu_custom_call.1} parent=1 // pred_fallthru
      _
    // Predicated region
    $region78: #{tpu_custom_call.1} parent=1 // pred_check
      _
    $region79: #{tpu_custom_call.1} parent=1 // pred_check_branch
      %329 = sbr.rel (0) target = $region81
    $region80: #{tpu_custom_call.1} parent=1 // pred_region
      %331 = dma.done [#allocation9], 256
    $region81: #{tpu_custom_call.1} parent=1 // pred_fallthru
      _
    %332 = vsyncpa [#allocation3], 1
    %333 = vsyncpa [#allocation6], 1
    %334 = vsyncpa [#allocation4], 1
    %335 = vsyncpa [#allocation9], 1

</llo_original>
